<compile_context>
chip_gen: v7x
topology: tpu7x:2x2x1
jax: 0.10.0
libtpu: 0.0.40
codegen_flags: <defaults>
</compile_context>

<pallas_src>
import functools

import jax
import jax.numpy as jnp
from jax.experimental import pallas as pl
from jax.experimental.pallas import tpu as pltpu

LANES = 128
SUBLANES = 8
# Per-input, per-buffer block byte budget: 2 MiB -> 4096 rows f32 / 8192 bf16.
# 2 inputs x 2 pipeline buffers x 2 MiB = 8 MiB of scoped VMEM.
TARGET_BLOCK_BYTES = 2 * 1024 * 1024


def _round_up(v, m):
    return ((v + m - 1) // m) * m


def _cdiv(a, b):
    return (a + b - 1) // b


def _num_parallel_cores():
    """2 on multi-TensorCore chips (v7x); 1 on single-TC chips (v5e/v6e)."""
    try:
        dev = jax.devices()[0]
        if dev.platform != "tpu":
            return 1
        kind = dev.device_kind.lower()
    except Exception:  # conservative fallback
        return 1
    return 2 if "v7" in kind else 1


def _pick_tiling(rows, itemsize, ncores_hint):
    """Byte-budget-driven row tile + exact-split core count (rows % 8 == 0)."""
    target_rows = max(SUBLANES, TARGET_BLOCK_BYTES // (LANES * itemsize))
    row_tile = min(target_rows, rows)
    row_tile = _round_up(row_tile, SUBLANES)
    num_tiles = _cdiv(rows, row_tile)

    ncores = ncores_hint if num_tiles >= ncores_hint else 1
    if ncores > 1 and num_tiles % ncores:
        # Shrink the tile slightly so the tile count splits exactly across the
        # TensorCores; keeps the duplicate-tile DMA / per-step mask path off.
        even_tiles = _round_up(num_tiles, ncores)
        alt_tile = _round_up(_cdiv(rows, even_tiles), SUBLANES)
        alt_tiles = _cdiv(rows, alt_tile)
        if alt_tiles % ncores == 0 and alt_tiles >= ncores:
            row_tile, num_tiles = alt_tile, alt_tiles
        else:
            ncores = 1
    steps = num_tiles // ncores
    return row_tile, num_tiles, ncores, steps


def _partial_sums_kernel(x_ref, t_ref, o_ref, *, rows, row_tile, steps,
                         num_tiles, ragged):
    c = pl.program_id(0)   # megacore / parallel axis (each core owns one block)
    i = pl.program_id(1)   # streaming reduction axis

    @pl.when(i == 0)
    def _():
        o_ref[...] = jnp.zeros_like(o_ref)

    # Cast on-chip; sigmoid runs on the VPU/EUP while the next block's DMA streams.
    p = jax.nn.sigmoid(x_ref[...].astype(jnp.float32))
    t = t_ref[...].astype(jnp.float32)

    sub = row_tile // SUBLANES

    def accumulate(pv, tv):
        # (row_tile,128) -> (row_tile//8, 8, 128) splits the sublane dim by the
        # native vreg tile, so the reshape is layout-preserving; the axis-0 sum
        # is a plain vreg add chain and each store is a full, unmasked (8,128)
        # vreg (no sublane-masked vst.msk).
        o_ref[0, 0, :, :] += jnp.sum((pv * tv).reshape(sub, SUBLANES, LANES), axis=0)
        o_ref[0, 1, :, :] += jnp.sum(pv.reshape(sub, SUBLANES, LANES), axis=0)
        o_ref[0, 2, :, :] += jnp.sum(tv.reshape(sub, SUBLANES, LANES), axis=0)

    if ragged:
        step_tile = c * steps + i
        is_last = step_tile == num_tiles - 1

        @pl.when(jnp.logical_not(is_last))
        def _():
            accumulate(p, t)

        @pl.when(is_last)
        def _():
            # Only the single overhanging tile pays for the iota + selects.
            row_ids = step_tile * row_tile + jax.lax.broadcasted_iota(
                jnp.int32, (row_tile, LANES), 0)
            valid = row_ids < rows
            # Keep this a select (NOT multiply-by-mask): it discards any
            # NaN/garbage in the out-of-bounds pad rows of the edge block.
            accumulate(jnp.where(valid, p, 0.0), jnp.where(valid, t, 0.0))
    else:
        accumulate(p, t)


def tversky_loss(inputs, targets, alpha, beta, smooth=1.0):
    """Pallas equivalent of TverskyLoss(alpha, beta)(inputs, targets, smooth)."""
    x = jnp.reshape(inputs, (-1,))
    t = jnp.reshape(targets, (-1,))
    n = x.shape[0]

    # Peel at an (8*128)-element boundary so the kernel's [rows,128] view is
    # always vreg-tile aligned (rows % 8 == 0, row_tile % 8 == 0).
    tail = n % (SUBLANES * LANES)
    bulk = n - tail

    if tail:
        # <1024-element ragged tail: plain JAX is cheaper than padding the
        # whole array through HBM.
        xt = x[bulk:].astype(jnp.float32)
        tt = t[bulk:].astype(jnp.float32)
        pt = jax.nn.sigmoid(xt)
        tail_sums = (jnp.sum(pt * tt), jnp.sum(pt), jnp.sum(tt))
    else:
        zero = jnp.float32(0.0)
        tail_sums = (zero, zero, zero)

    if bulk:
        rows = bulk // LANES
        # TODO(synk): when tail > 0, x[:bulk]/t[:bulk] materializes a slice
        # copy before the pallas_call (verify allow_input_fusion in HLO if the
        # ragged case ever becomes hot); with tail == 0 the reshape is free.
        x2 = x[:bulk].reshape(rows, LANES)
        t2 = t[:bulk].reshape(rows, LANES)

        itemsize = max(jnp.dtype(x2.dtype).itemsize, jnp.dtype(t2.dtype).itemsize)
        row_tile, num_tiles, ncores, steps = _pick_tiling(
            rows, itemsize, _num_parallel_cores())
        ragged = num_tiles * row_tile != rows

        def in_idx(c, i):
            return (c * steps + i, 0)

        kernel = functools.partial(
            _partial_sums_kernel, rows=rows, row_tile=row_tile, steps=steps,
            num_tiles=num_tiles, ragged=ragged)

        partial = pl.pallas_call(
            kernel,
            out_shape=jax.ShapeDtypeStruct((ncores, 3, SUBLANES, LANES),
                                           jnp.float32),
            grid_spec=pltpu.PrefetchScalarGridSpec(
                num_scalar_prefetch=0,
                grid=(ncores, steps),
                in_specs=[
                    pl.BlockSpec((row_tile, LANES), in_idx),
                    pl.BlockSpec((row_tile, LANES), in_idx),
                ],
                out_specs=pl.BlockSpec((1, 3, SUBLANES, LANES),
                                       lambda c, i: (c, 0, 0, 0)),
            ),
            compiler_params=pltpu.CompilerParams(
                dimension_semantics=("parallel", "arbitrary")),
        )(x2, t2)

        sums = jnp.sum(partial, axis=(0, 2, 3))   # (3,): TP, sum(p), sum(t)
        tp = sums[0] + tail_sums[0]
        sp = sums[1] + tail_sums[1]
        st = sums[2] + tail_sums[2]
    else:
        tp, sp, st = tail_sums

    # FP = sum((1-t)*p) = sum(p) - TP ;  FN = sum(t*(1-p)) = sum(t) - TP.
    fp = sp - tp
    fn = st - tp
    tversky = (tp + smooth) / (tp + alpha * fp + beta * fn + smooth)
    return 1.0 - tversky


def _tversky_loss_ref(inputs, targets, alpha, beta, smooth=1.0):
    p = jax.nn.sigmoid(inputs.astype(jnp.float32)).reshape(-1)
    t = targets.astype(jnp.float32).reshape(-1)
    tp = jnp.sum(p * t)
    fp = jnp.sum((1.0 - t) * p)
    fn = jnp.sum(t * (1.0 - p))
    return 1.0 - (tp + smooth) / (tp + alpha * fp + beta * fn + smooth)


if __name__ == "__main__":
    key = jax.random.PRNGKey(0)
    k1, k2 = jax.random.split(key)

    # NCHW-shaped logits and binary targets, like the PyTorch module expects.
    shape = (2, 4, 16, 16)
    inputs = jax.random.normal(k1, shape, dtype=jnp.float32)
    targets = (jax.random.uniform(k2, shape) > 0.5).astype(jnp.float32)

    alpha, beta = 0.7, 0.3

    loss = jax.block_until_ready(tversky_loss(inputs, targets, alpha, beta))
    ref = jax.block_until_ready(_tversky_loss_ref(inputs, targets, alpha, beta))

    assert jnp.allclose(loss, ref, atol=1e-5, rtol=1e-5), (loss, ref)
    print("KERNEL_OK")
</pallas_src>

<mosaic_0001>
module attributes {stable_mosaic.version = 11 : i64} {
  func.func @_partial_sums_kernel(%arg0: i32, %arg1: i32, %arg2: memref<16x128xf32, #tpu.memory_space<vmem>>, %arg3: memref<16x128xf32, #tpu.memory_space<vmem>>, %arg4: memref<1x3x8x128xf32, #tpu.memory_space<vmem>>) attributes {dimension_semantics = [#tpu.dimension_semantics<parallel>, #tpu.dimension_semantics<arbitrary>], iteration_bounds = array<i64: 1, 1>, scalar_prefetch = 0 : i64, scratch_operands = 0 : i64, tpu.core_type = #tpu.core_type<tc>, window_params = [{transform_indices = @transform_0, window_bounds = array<i64: 16, 128>}, {transform_indices = @transform_1, window_bounds = array<i64: 16, 128>}, {transform_indices = @transform_2, window_bounds = array<i64: 1, 3, 8, 128>}]} {
    %c0_i32 = arith.constant 0 : i32
    %0 = arith.cmpi eq, %arg1, %c0_i32 : i32
    %1 = arith.extui %0 : i1 to i32
    %c0_i32_0 = arith.constant 0 : i32
    %2 = arith.cmpi ne, %1, %c0_i32_0 : i32
    scf.if %2 {
      %cst_29 = arith.constant 0.000000e+00 : f32
      %35 = vector.broadcast %cst_29 : f32 to vector<1x3x8x128xf32>
      %c0_30 = arith.constant 0 : index
      %c0_31 = arith.constant 0 : index
      %c0_32 = arith.constant 0 : index
      %c0_33 = arith.constant 0 : index
      %36 = vector.load %arg4[%c0_30, %c0_31, %c0_32, %c0_33] : memref<1x3x8x128xf32, #tpu.memory_space<vmem>>, vector<1x3x8x128xf32>
      tpu.vector_store %arg4[%c0_30, %c0_31, %c0_32, %c0_33], %35 {strides = array<i32>} : memref<1x3x8x128xf32, #tpu.memory_space<vmem>>, vector<1x3x8x128xf32>,
    } else {
    }
    %c0 = arith.constant 0 : index
    %c0_1 = arith.constant 0 : index
    %3 = vector.load %arg2[%c0, %c0_1] : memref<16x128xf32, #tpu.memory_space<vmem>>, vector<16x128xf32>
    %4 = arith.negf %3 : vector<16x128xf32>
    %5 = math.exp %4 : vector<16x128xf32>
    %cst = arith.constant 1.000000e+00 : f32
    %6 = vector.broadcast %cst : f32 to vector<16x128xf32>
    %7 = arith.addf %6, %5 : vector<16x128xf32>
    %8 = arith.divf %6, %7 : vector<16x128xf32>
    %c0_2 = arith.constant 0 : index
    %c0_3 = arith.constant 0 : index
    %9 = vector.load %arg3[%c0_2, %c0_3] : memref<16x128xf32, #tpu.memory_space<vmem>>, vector<16x128xf32>
    %c0_4 = arith.constant 0 : index
    %c0_5 = arith.constant 0 : index
    %c0_6 = arith.constant 0 : index
    %c0_7 = arith.constant 0 : index
    %10 = vector.load %arg4[%c0_4, %c0_5, %c0_6, %c0_7] : memref<1x3x8x128xf32, #tpu.memory_space<vmem>>, vector<1x1x8x128xf32>
    %11 = vector.shape_cast %10 : vector<1x1x8x128xf32> to vector<8x128xf32>
    %12 = arith.mulf %8, %9 : vector<16x128xf32>
    %13 = vector.shape_cast %12 : vector<16x128xf32> to vector<2x8x128xf32>
    %cst_8 = arith.constant dense<0.000000e+00> : vector<8x128xf32>
    %14 = vector.multi_reduction <add>, %13, %cst_8 [0] : vector<2x8x128xf32> to vector<8x128xf32>
    %15 = arith.addf %11, %14 : vector<8x128xf32>
    %c0_9 = arith.constant 0 : index
    %c0_10 = arith.constant 0 : index
    %c0_11 = arith.constant 0 : index
    %c0_12 = arith.constant 0 : index
    %16 = vector.load %arg4[%c0_9, %c0_10, %c0_11, %c0_12] : memref<1x3x8x128xf32, #tpu.memory_space<vmem>>, vector<1x1x8x128xf32>
    %17 = vector.shape_cast %16 : vector<1x1x8x128xf32> to vector<8x128xf32>
    %18 = vector.shape_cast %15 : vector<8x128xf32> to vector<1x1x8x128xf32>
    tpu.vector_store %arg4[%c0_9, %c0_10, %c0_11, %c0_12], %18 {strides = array<i32>} : memref<1x3x8x128xf32, #tpu.memory_space<vmem>>, vector<1x1x8x128xf32>,
    %c0_13 = arith.constant 0 : index
    %c1 = arith.constant 1 : index
    %c0_14 = arith.constant 0 : index
    %c0_15 = arith.constant 0 : index
    %19 = vector.load %arg4[%c0_13, %c1, %c0_14, %c0_15] : memref<1x3x8x128xf32, #tpu.memory_space<vmem>>, vector<1x1x8x128xf32>
    %20 = vector.shape_cast %19 : vector<1x1x8x128xf32> to vector<8x128xf32>
    %21 = vector.shape_cast %8 : vector<16x128xf32> to vector<2x8x128xf32>
    %cst_16 = arith.constant dense<0.000000e+00> : vector<8x128xf32>
    %22 = vector.multi_reduction <add>, %21, %cst_16 [0] : vector<2x8x128xf32> to vector<8x128xf32>
    %23 = arith.addf %20, %22 : vector<8x128xf32>
    %c0_17 = arith.constant 0 : index
    %c1_18 = arith.constant 1 : index
    %c0_19 = arith.constant 0 : index
    %c0_20 = arith.constant 0 : index
    %24 = vector.load %arg4[%c0_17, %c1_18, %c0_19, %c0_20] : memref<1x3x8x128xf32, #tpu.memory_space<vmem>>, vector<1x1x8x128xf32>
    %25 = vector.shape_cast %24 : vector<1x1x8x128xf32> to vector<8x128xf32>
    %26 = vector.shape_cast %23 : vector<8x128xf32> to vector<1x1x8x128xf32>
    tpu.vector_store %arg4[%c0_17, %c1_18, %c0_19, %c0_20], %26 {strides = array<i32>} : memref<1x3x8x128xf32, #tpu.memory_space<vmem>>, vector<1x1x8x128xf32>,
    %c0_21 = arith.constant 0 : index
    %c2 = arith.constant 2 : index
    %c0_22 = arith.constant 0 : index
    %c0_23 = arith.constant 0 : index
    %27 = vector.load %arg4[%c0_21, %c2, %c0_22, %c0_23] : memref<1x3x8x128xf32, #tpu.memory_space<vmem>>, vector<1x1x8x128xf32>
    %28 = vector.shape_cast %27 : vector<1x1x8x128xf32> to vector<8x128xf32>
    %29 = vector.shape_cast %9 : vector<16x128xf32> to vector<2x8x128xf32>
    %cst_24 = arith.constant dense<0.000000e+00> : vector<8x128xf32>
    %30 = vector.multi_reduction <add>, %29, %cst_24 [0] : vector<2x8x128xf32> to vector<8x128xf32>
    %31 = arith.addf %28, %30 : vector<8x128xf32>
    %c0_25 = arith.constant 0 : index
    %c2_26 = arith.constant 2 : index
    %c0_27 = arith.constant 0 : index
    %c0_28 = arith.constant 0 : index
    %32 = vector.load %arg4[%c0_25, %c2_26, %c0_27, %c0_28] : memref<1x3x8x128xf32, #tpu.memory_space<vmem>>, vector<1x1x8x128xf32>
    %33 = vector.shape_cast %32 : vector<1x1x8x128xf32> to vector<8x128xf32>
    %34 = vector.shape_cast %31 : vector<8x128xf32> to vector<1x1x8x128xf32>
    tpu.vector_store %arg4[%c0_25, %c2_26, %c0_27, %c0_28], %34 {strides = array<i32>} : memref<1x3x8x128xf32, #tpu.memory_space<vmem>>, vector<1x1x8x128xf32>,
    return
  }
  func.func @transform_0(%arg0: i32, %arg1: i32) -> (i32, i32) {
    %c1_i32 = arith.constant 1 : i32
    %0 = arith.muli %arg0, %c1_i32 : i32
    %1 = arith.addi %0, %arg1 : i32
    %c0_i32 = arith.constant 0 : i32
    %c0_i32_0 = arith.constant 0 : i32
    return %1, %c0_i32 : i32, i32
  }
  func.func @transform_1(%arg0: i32, %arg1: i32) -> (i32, i32) {
    %c1_i32 = arith.constant 1 : i32
    %0 = arith.muli %arg0, %c1_i32 : i32
    %1 = arith.addi %0, %arg1 : i32
    %c0_i32 = arith.constant 0 : i32
    %c0_i32_0 = arith.constant 0 : i32
    return %1, %c0_i32 : i32, i32
  }
  func.func @transform_2(%arg0: i32, %arg1: i32) -> (i32, i32, i32, i32) {
    %c0_i32 = arith.constant 0 : i32
    %c0_i32_0 = arith.constant 0 : i32
    %c0_i32_1 = arith.constant 0 : i32
    %c0_i32_2 = arith.constant 0 : i32
    return %arg0, %c0_i32, %c0_i32_0, %c0_i32_1 : i32, i32, i32, i32
  }
}

</mosaic_0001>

<llo_original>
// kernel: tpu_custom_call.1
$region0: #{tpu_custom_call.1}
  #allocation0 [shape = 'u32[]', space=smem, size = 0x4, offset = 0x4, fixed_abs, tag = 'smem constant byte address 0x4 - core index']
  #allocation1 [shape = 'u32[144,128]{1,0:T(1,128)}', space=vmem, size = 0x12000, scoped, tag = 'internal scratch']
  %s0 = inlined_call_operand.hbm [shape: f32[16,128], index: 0, kind: input, shape index: {}]
  %s1 = inlined_call_operand.hbm [shape: f32[16,128], index: 1, kind: input, shape index: {}]
  %s2 = inlined_call_operand.hbm [shape: f32[1,3,8,128], index: 2, kind: output, shape index: {}]
  %s3 = sld [smem:[#allocation0]]
  $region30: #{tpu_custom_call.1} parent=0
    _
  %s5 = ssub.s32 1, %s3
  %s6 = scalar_select 0, %s5, %s3
  $region1: #{tpu_custom_call.1} parent=0
    #allocation2 [shape = 'u8[8192]{0}', space=vmem, size = 0x2000, scoped, tag = 'input window, operand 0, single buffered']
    #allocation3 [shape = 's32[1]{0}', space=sflag, size = 0x4, scoped, tag = 'scoped memory for tpu_custom_call.1']
    #allocation4 [shape = 's32[1]{0}', space=sflag, size = 0x4, scoped, tag = 'scoped memory for tpu_custom_call.1']
    #allocation5 [shape = 'u8[8192]{0}', space=vmem, size = 0x2000, scoped, tag = 'input window, operand 1, single buffered']
    #allocation6 [shape = 's32[1]{0}', space=sflag, size = 0x4, scoped, tag = 'scoped memory for tpu_custom_call.1']
    #allocation7 [shape = 'u8[12288]{0}', space=vmem, size = 0x3000, scoped, tag = 'output window, operand 0, single buffered']
    %7 = vsyncpa [#allocation3], 0
    %8 = vsyncpa [#allocation6], 0
    %9 = vsyncpa [#allocation4], 0
    // Predicated region
    $region2: #{tpu_custom_call.1} parent=1 // pred_check
      _
    $region3: #{tpu_custom_call.1} parent=1 // pred_check_branch
      %11 = sbr.rel (0) target = $region5
    $region4: #{tpu_custom_call.1} parent=1 // pred_region
      %s12 = sadd.s32 0, 0
      %s13 = smul.u32 2, %s12
      %s15 = ssub.s32 256, 256
      %16 = vsyncadd [#allocation3], %s15
      %s17 = smul.addr %s13, 128
      %s18 = scalar_lea.hbm %s0, %s17
      %s19 = sshll.u32 [#allocation2], 4
      %s20 = int_to_ptr.vmem [resolvable:$true] %s19
      %25 = dma.hbm_to_vmem [thread:$0]  %s18, 256, %s20, [#allocation3], 128, 128, 8
    $region5: #{tpu_custom_call.1} parent=1 // pred_fallthru
      _
    // Predicated region
    $region6: #{tpu_custom_call.1} parent=1 // pred_check
      _
    $region7: #{tpu_custom_call.1} parent=1 // pred_check_branch
      %27 = sbr.rel (0) target = $region9
    $region8: #{tpu_custom_call.1} parent=1 // pred_region
      %s28 = sadd.s32 0, 0
      %s29 = smul.u32 2, %s28
      %s31 = ssub.s32 256, 256
      %32 = vsyncadd [#allocation6], %s31
      %s33 = smul.addr %s29, 128
      %s34 = scalar_lea.hbm %s1, %s33
      %s35 = sshll.u32 [#allocation5], 4
      %s36 = int_to_ptr.vmem [resolvable:$true] %s35
      %41 = dma.hbm_to_vmem [thread:$0]  %s34, 256, %s36, [#allocation6], 128, 128, 8
    $region9: #{tpu_custom_call.1} parent=1 // pred_fallthru
      _
    // Predicated region
    $region10: #{tpu_custom_call.1} parent=1 // pred_check
      _
    $region11: #{tpu_custom_call.1} parent=1 // pred_check_branch
      %43 = sbr.rel (0) target = $region13
    $region12: #{tpu_custom_call.1} parent=1 // pred_region
      %44 = dma.done [#allocation3], 256
    $region13: #{tpu_custom_call.1} parent=1 // pred_fallthru
      _
    // Predicated region
    $region14: #{tpu_custom_call.1} parent=1 // pred_check
      _
    $region15: #{tpu_custom_call.1} parent=1 // pred_check_branch
      %46 = sbr.rel (0) target = $region17
    $region16: #{tpu_custom_call.1} parent=1 // pred_region
      %47 = dma.done [#allocation6], 256
    $region17: #{tpu_custom_call.1} parent=1 // pred_fallthru
      _
    %s48 = sadd.s32 0, 0
    %s49 = smul.u32 2, %s48
    %s50 = sadd.s32 0, 0
    %s51 = smul.u32 2, %s50
    %p52 = scmp.eq.s32.totalorder 0, 0
    // Predicated region
    $region18: #{tpu_custom_call.1} parent=1 // pred_check
      %p53 = pneg %p52
    $region19: #{tpu_custom_call.1} parent=1 // pred_check_branch
      %55 = sbr.rel (%p53) target = $region21
    $region20: #{tpu_custom_call.1} parent=1 // pred_region
      %56 = vst [vmem:[#allocation7] sm:$0xff] 0.0
      %57 = vst [vmem:[#allocation7 + $0x8] sm:$0xff] 0.0
      %58 = vst [vmem:[#allocation7 + $0x10] sm:$0xff] 0.0
    $region21: #{tpu_custom_call.1} parent=1 // pred_fallthru
      _
    %v59 = vld [vmem:[#allocation2] sm:$0xff]
    %v60 = vld [vmem:[#allocation2 + $0x8] sm:$0xff]
    %v61 = vxor.u32 %v59, 2147483648
    %v62 = vxor.u32 %v60, 2147483648
    %v63 = vmul.f32 %v61, 1.442695
    %v64 = vpow.pop %v63
    %v65 = vmul.f32 %v62, 1.442695
    %v66 = vpow.pop %v65
    %v67 = vadd.f32 %v64, 1.0
    %v68 = vadd.f32 %v66, 1.0
    %v69 = vrcp.pop %v67
    %v70 = vmul.f32 1.0, %v69
    %v71 = vrcp.pop %v68
    %v72 = vmul.f32 1.0, %v71
    %v73 = vld [vmem:[#allocation5] sm:$0xff]
    %v74 = vld [vmem:[#allocation5 + $0x8] sm:$0xff]
    %v75 = vld [vmem:[#allocation7] sm:$0xff]
    %v76 = vmul.f32 %v70, %v73
    %v77 = vmul.f32 %v72, %v74
    %v78 = vadd.f32 %v76, %v77
    %v79 = vadd.f32 %v75, %v78
    %80 = vst [vmem:[#allocation7] sm:$0xff] %v79
    %s81 = scalar_lea.vmem [#allocation7], 8
    %v82 = vld [vmem:[%s81] sm:$0xff]
    %v83 = vadd.f32 %v70, %v72
    %v84 = vadd.f32 %v82, %v83
    %85 = vst [vmem:[%s81] sm:$0xff] %v84
    %s86 = scalar_lea.vmem [#allocation7], 16
    %v87 = vld [vmem:[%s86] sm:$0xff]
    %v88 = vadd.f32 %v73, %v74
    %v89 = vadd.f32 %v87, %v88
    %90 = vst [vmem:[%s86] sm:$0xff] %v89
    // Predicated region
    $region22: #{tpu_custom_call.1} parent=1 // pred_check
      _
    $region23: #{tpu_custom_call.1} parent=1 // pred_check_branch
      %92 = sbr.rel (0) target = $region25
    $region24: #{tpu_custom_call.1} parent=1 // pred_region
      %s94 = ssub.s32 384, 384
      %95 = vsyncadd [#allocation4], %s94
      %s96 = sshll.u32 [#allocation7], 4
      %s97 = int_to_ptr.vmem [resolvable:$true] %s96
      %102 = dma.vmem_to_hbm [thread:$0]  %s97, 384, %s2, [#allocation4], 128, 128, 8
    $region25: #{tpu_custom_call.1} parent=1 // pred_fallthru
      _
    // Predicated region
    $region26: #{tpu_custom_call.1} parent=1 // pred_check
      _
    $region27: #{tpu_custom_call.1} parent=1 // pred_check_branch
      %104 = sbr.rel (0) target = $region29
    $region28: #{tpu_custom_call.1} parent=1 // pred_region
      %105 = dma.done [#allocation4], 384
    $region29: #{tpu_custom_call.1} parent=1 // pred_fallthru
      _
    %106 = vsyncpa [#allocation3], 1
    %107 = vsyncpa [#allocation6], 1
    %108 = vsyncpa [#allocation4], 1

</llo_original>
